<compile_context>
chip_gen: v5e
topology: v5e:2x2
jax: 0.10.0
libtpu: 0.0.40
codegen_flags: <defaults>
</compile_context>

<pallas_src>
import functools

import jax
import jax.numpy as jnp
from jax.experimental import pallas as pl
from jax.experimental.pallas import tpu as pltpu


def _round_up(x, m):
    return (x + m - 1) // m * m


def _leaky_relu(x, slope=0.2):
    return jnp.where(x > 0, x, slope * x)


def mlp_decoder_kernel(x_ref, w0_ref, b0_ref, wr_ref, br_ref, o_ref, *, num_layers):
    # x_ref:  [TM, in_pad]            (bf16)
    # w0_ref: [in_pad, size_pad]      (bf16)
    # b0_ref: [1, size_pad]           (f32)
    # wr_ref: [L, size_pad, size_pad] (bf16)
    # br_ref: [L, 1, size_pad]        (f32)
    # o_ref:  [TM, size_pad]
    h = jnp.dot(x_ref[...], w0_ref[...], preferred_element_type=jnp.float32)
    h = h + b0_ref[...]                       # f32 bias, broadcast over rows
    br = br_ref[...]                          # read all residual biases once (f32)
    # Residual blocks: x + Linear(LeakyReLU(Dropout(x)))  (dropout = identity, eval mode)
    for layer in range(num_layers):           # small static loop, fully unrolled
        a = _leaky_relu(h, 0.2)
        h = h + jnp.dot(a.astype(wr_ref.dtype), wr_ref[layer],
                        preferred_element_type=jnp.float32) + br[layer]
    # final LeakyReLU, lane-dense store
    o_ref[...] = _leaky_relu(h, 0.2).astype(o_ref.dtype)


def init_mlp_decoder_params(key, in_size, size, num_layers=4, dtype=jnp.float32):
    """Deterministic synthetic params. Weight-norm: w = g * v / ||v||_row.

    Returns logical (unpadded) f32 params:
      w0 [in_size, size], b0 [size], wr [L, size, size], br [L, size]
    """
    ks = jax.random.split(key, 3 * (num_layers + 1))

    def wn_linear(kv, kg, kb, fan_in, fan_out):
        # PyTorch Linear weight is (out, in); weight_norm normalizes over dim=1 (in).
        bound = 1.0 / jnp.sqrt(fan_in)
        v = jax.random.uniform(kv, (fan_out, fan_in), dtype, -bound, bound)
        g = jax.random.uniform(kg, (fan_out, 1), dtype, 0.5, 1.5)
        b = jax.random.uniform(kb, (fan_out,), dtype, -bound, bound)
        norm = jnp.sqrt(jnp.sum(v.astype(jnp.float32) ** 2, axis=1, keepdims=True))
        w_eff = (g.astype(jnp.float32) * v.astype(jnp.float32) / norm).astype(dtype)
        # transpose to [in, out] for the kernel's h @ W convention
        return w_eff.T, b

    w0, b0 = wn_linear(ks[0], ks[1], ks[2], in_size, size)
    wr_list, br_list = [], []
    for l in range(num_layers):
        w, b = wn_linear(ks[3 + 3 * l], ks[4 + 3 * l], ks[5 + 3 * l], size, size)
        wr_list.append(w)
        br_list.append(b)
    wr = jnp.stack(wr_list, axis=0)     # [L, size, size]
    br = jnp.stack(br_list, axis=0)     # [L, size]
    return w0, b0, wr, br


def mlp_decoder_forward(x, states, params, *, num_layers=4, tm=512):
    """x: (B, T, in_size) batch_first. Returns (y, states) with y: (B, T, size)."""
    w0, b0, wr, br = params
    B, T, in_size = x.shape
    size = w0.shape[1]
    N = B * T

    # --- layout plumbing: lane-pad feature dims to 128, row-pad N to the tile ---
    in_pad = _round_up(in_size, 128)
    size_pad = _round_up(size, 128)
    TM = tm if N >= tm else _round_up(N, 8)
    N_pad = _round_up(N, TM)

    xf = x.reshape(N, in_size).astype(jnp.bfloat16)
    xf = jnp.pad(xf, ((0, N_pad - N), (0, in_pad - in_size)))

    # Zero-padding weights keeps the valid output columns exactly unchanged.
    w0_p = jnp.pad(w0, ((0, in_pad - in_size), (0, size_pad - size))).astype(jnp.bfloat16)
    b0_p = jnp.pad(b0, (0, size_pad - size)).astype(jnp.float32)[None, :]
    wr_p = jnp.pad(wr, ((0, 0), (0, size_pad - size), (0, size_pad - size))).astype(jnp.bfloat16)
    br_p = jnp.pad(br, ((0, 0), (0, size_pad - size))).astype(jnp.float32)[:, None, :]

    grid = (N_pad // TM,)
    flops = 2 * N_pad * size_pad * (in_pad + num_layers * size_pad)
    bytes_accessed = (xf.size * 2 + N_pad * size_pad * jnp.dtype(x.dtype).itemsize
                      + w0_p.size * 2 + wr_p.size * 2 + b0_p.size * 4 + br_p.size * 4)

    kernel = functools.partial(mlp_decoder_kernel, num_layers=num_layers)
    yf = pl.pallas_call(
        kernel,
        out_shape=jax.ShapeDtypeStruct((N_pad, size_pad), x.dtype),
        grid=grid,
        in_specs=[
            # x is tiled over rows; weights/biases have constant index maps so they
            # stay resident in VMEM across grid steps.
            pl.BlockSpec((TM, in_pad), lambda i: (i, 0)),
            pl.BlockSpec((in_pad, size_pad), lambda i: (0, 0)),
            pl.BlockSpec((1, size_pad), lambda i: (0, 0)),
            pl.BlockSpec((num_layers, size_pad, size_pad), lambda i: (0, 0, 0)),
            pl.BlockSpec((num_layers, 1, size_pad), lambda i: (0, 0, 0)),
        ],
        out_specs=pl.BlockSpec((TM, size_pad), lambda i: (i, 0)),
        compiler_params=pltpu.CompilerParams(
            dimension_semantics=("parallel",)),
        cost_estimate=pl.CostEstimate(
            flops=int(flops), transcendentals=0, bytes_accessed=int(bytes_accessed)),
    )(xf, w0_p, b0_p, wr_p, br_p)

    y = yf[:N, :size].reshape(B, T, size)
    return y, states


def reference_forward(x, states, params, *, num_layers=4):
    """Pure-JAX reference matching the PyTorch module semantics (eval mode).

    Mirrors the kernel's bf16 matmul inputs (f32 accumulation) so the check is tight.
    """
    w0, b0, wr, br = params
    B, T, in_size = x.shape
    size = w0.shape[1]
    h = jnp.dot(x.reshape(-1, in_size).astype(jnp.bfloat16), w0.astype(jnp.bfloat16),
                preferred_element_type=jnp.float32) + b0
    for l in range(num_layers):
        a = jnp.where(h > 0, h, 0.2 * h)
        h = h + jnp.dot(a.astype(jnp.bfloat16), wr[l].astype(jnp.bfloat16),
                        preferred_element_type=jnp.float32) + br[l]
    y = jnp.where(h > 0, h, 0.2 * h).astype(x.dtype).reshape(B, T, size)
    return y, states


if __name__ == "__main__":
    B, T = 2, 8
    in_size, size, num_layers = 32, 64, 4

    key = jax.random.PRNGKey(0)
    k_x, k_p = jax.random.split(key)
    x = jax.random.normal(k_x, (B, T, in_size), jnp.float32)
    params = init_mlp_decoder_params(k_p, in_size, size, num_layers=num_layers)
    states = None

    y, out_states = mlp_decoder_forward(x, states, params, num_layers=num_layers)
    y = jax.block_until_ready(y)

    y_ref, _ = reference_forward(x, states, params, num_layers=num_layers)
    assert y.shape == (B, T, size), y.shape
    assert jnp.allclose(y, y_ref, atol=1e-3, rtol=1e-3), "mismatch vs reference"
    print("KERNEL_OK")
</pallas_src>

<mosaic_0001>
module attributes {stable_mosaic.version = 11 : i64} {
  func.func @mlp_decoder_kernel(%arg0: i32, %arg1: memref<16x128xbf16, #tpu.memory_space<vmem>>, %arg2: memref<128x128xbf16, #tpu.memory_space<vmem>>, %arg3: memref<1x128xf32, #tpu.memory_space<vmem>>, %arg4: memref<4x128x128xbf16, #tpu.memory_space<vmem>>, %arg5: memref<4x1x128xf32, #tpu.memory_space<vmem>>, %arg6: memref<16x128xf32, #tpu.memory_space<vmem>>) attributes {dimension_semantics = [#tpu.dimension_semantics<parallel>], iteration_bounds = array<i64: 1>, scalar_prefetch = 0 : i64, scratch_operands = 0 : i64, tpu.core_type = #tpu.core_type<tc>, window_params = [{transform_indices = @transform_0, window_bounds = array<i64: 16, 128>}, {pipeline_mode = #tpu.pipeline_mode<synchronous>, transform_indices = @transform_1, window_bounds = array<i64: 128, 128>}, {pipeline_mode = #tpu.pipeline_mode<synchronous>, transform_indices = @transform_2, window_bounds = array<i64: 1, 128>}, {pipeline_mode = #tpu.pipeline_mode<synchronous>, transform_indices = @transform_3, window_bounds = array<i64: 4, 128, 128>}, {pipeline_mode = #tpu.pipeline_mode<synchronous>, transform_indices = @transform_4, window_bounds = array<i64: 4, 1, 128>}, {transform_indices = @transform_5, window_bounds = array<i64: 16, 128>}]} {
    %c0 = arith.constant 0 : index
    %c0_0 = arith.constant 0 : index
    %0 = vector.load %arg1[%c0, %c0_0] : memref<16x128xbf16, #tpu.memory_space<vmem>>, vector<16x128xbf16>
    %c0_1 = arith.constant 0 : index
    %c0_2 = arith.constant 0 : index
    %1 = vector.load %arg2[%c0_1, %c0_2] : memref<128x128xbf16, #tpu.memory_space<vmem>>, vector<128x128xbf16>
    %cst = arith.constant dense<0.000000e+00> : vector<16x128xf32>
    %2 = tpu.matmul %0, %1, %cst {dimension_numbers = #tpu.dot_dimension_numbers<[1], [0], [0], [1], [0, 0, 1, 1], [], []>} : vector<16x128xbf16>, vector<128x128xbf16>, vector<16x128xf32> -> vector<16x128xf32>
    %c0_3 = arith.constant 0 : index
    %c0_4 = arith.constant 0 : index
    %3 = vector.load %arg3[%c0_3, %c0_4] : memref<1x128xf32, #tpu.memory_space<vmem>>, vector<1x128xf32>
    %4 = vector.broadcast %3 : vector<1x128xf32> to vector<16x128xf32>
    %5 = arith.addf %2, %4 : vector<16x128xf32>
    %c0_5 = arith.constant 0 : index
    %c0_6 = arith.constant 0 : index
    %c0_7 = arith.constant 0 : index
    %6 = vector.load %arg5[%c0_5, %c0_6, %c0_7] : memref<4x1x128xf32, #tpu.memory_space<vmem>>, vector<4x1x128xf32>
    %cst_8 = arith.constant 0.000000e+00 : f32
    %7 = vector.broadcast %cst_8 : f32 to vector<16x128xf32>
    %8 = arith.cmpf ogt, %5, %7 : vector<16x128xf32>
    %cst_9 = arith.constant 2.000000e-01 : f32
    %9 = vector.broadcast %cst_9 : f32 to vector<16x128xf32>
    %10 = arith.mulf %9, %5 : vector<16x128xf32>
    %11 = arith.select %8, %5, %10 : vector<16x128xi1>, vector<16x128xf32>
    %12 = arith.truncf %11 : vector<16x128xf32> to vector<16x128xbf16>
    %c0_10 = arith.constant 0 : index
    %c0_11 = arith.constant 0 : index
    %c0_12 = arith.constant 0 : index
    %13 = vector.load %arg4[%c0_10, %c0_11, %c0_12] : memref<4x128x128xbf16, #tpu.memory_space<vmem>>, vector<1x128x128xbf16>
    %14 = vector.shape_cast %13 : vector<1x128x128xbf16> to vector<128x128xbf16>
    %cst_13 = arith.constant dense<0.000000e+00> : vector<16x128xf32>
    %15 = tpu.matmul %12, %14, %cst_13 {dimension_numbers = #tpu.dot_dimension_numbers<[1], [0], [0], [1], [0, 0, 1, 1], [], []>} : vector<16x128xbf16>, vector<128x128xbf16>, vector<16x128xf32> -> vector<16x128xf32>
    %16 = arith.addf %5, %15 : vector<16x128xf32>
    %17 = vector.extract_strided_slice %6 {offsets = [0, 0, 0], sizes = [1, 1, 128], strides = [1, 1, 1]} : vector<4x1x128xf32> to vector<1x1x128xf32>
    %18 = vector.shape_cast %17 : vector<1x1x128xf32> to vector<1x128xf32>
    %19 = vector.broadcast %18 : vector<1x128xf32> to vector<16x128xf32>
    %20 = arith.addf %16, %19 : vector<16x128xf32>
    %cst_14 = arith.constant 0.000000e+00 : f32
    %21 = vector.broadcast %cst_14 : f32 to vector<16x128xf32>
    %22 = arith.cmpf ogt, %20, %21 : vector<16x128xf32>
    %cst_15 = arith.constant 2.000000e-01 : f32
    %23 = vector.broadcast %cst_15 : f32 to vector<16x128xf32>
    %24 = arith.mulf %23, %20 : vector<16x128xf32>
    %25 = arith.select %22, %20, %24 : vector<16x128xi1>, vector<16x128xf32>
    %26 = arith.truncf %25 : vector<16x128xf32> to vector<16x128xbf16>
    %c1 = arith.constant 1 : index
    %c0_16 = arith.constant 0 : index
    %c0_17 = arith.constant 0 : index
    %27 = vector.load %arg4[%c1, %c0_16, %c0_17] : memref<4x128x128xbf16, #tpu.memory_space<vmem>>, vector<1x128x128xbf16>
    %28 = vector.shape_cast %27 : vector<1x128x128xbf16> to vector<128x128xbf16>
    %cst_18 = arith.constant dense<0.000000e+00> : vector<16x128xf32>
    %29 = tpu.matmul %26, %28, %cst_18 {dimension_numbers = #tpu.dot_dimension_numbers<[1], [0], [0], [1], [0, 0, 1, 1], [], []>} : vector<16x128xbf16>, vector<128x128xbf16>, vector<16x128xf32> -> vector<16x128xf32>
    %30 = arith.addf %20, %29 : vector<16x128xf32>
    %31 = vector.extract_strided_slice %6 {offsets = [1, 0, 0], sizes = [1, 1, 128], strides = [1, 1, 1]} : vector<4x1x128xf32> to vector<1x1x128xf32>
    %32 = vector.shape_cast %31 : vector<1x1x128xf32> to vector<1x128xf32>
    %33 = vector.broadcast %32 : vector<1x128xf32> to vector<16x128xf32>
    %34 = arith.addf %30, %33 : vector<16x128xf32>
    %cst_19 = arith.constant 0.000000e+00 : f32
    %35 = vector.broadcast %cst_19 : f32 to vector<16x128xf32>
    %36 = arith.cmpf ogt, %34, %35 : vector<16x128xf32>
    %cst_20 = arith.constant 2.000000e-01 : f32
    %37 = vector.broadcast %cst_20 : f32 to vector<16x128xf32>
    %38 = arith.mulf %37, %34 : vector<16x128xf32>
    %39 = arith.select %36, %34, %38 : vector<16x128xi1>, vector<16x128xf32>
    %40 = arith.truncf %39 : vector<16x128xf32> to vector<16x128xbf16>
    %c2 = arith.constant 2 : index
    %c0_21 = arith.constant 0 : index
    %c0_22 = arith.constant 0 : index
    %41 = vector.load %arg4[%c2, %c0_21, %c0_22] : memref<4x128x128xbf16, #tpu.memory_space<vmem>>, vector<1x128x128xbf16>
    %42 = vector.shape_cast %41 : vector<1x128x128xbf16> to vector<128x128xbf16>
    %cst_23 = arith.constant dense<0.000000e+00> : vector<16x128xf32>
    %43 = tpu.matmul %40, %42, %cst_23 {dimension_numbers = #tpu.dot_dimension_numbers<[1], [0], [0], [1], [0, 0, 1, 1], [], []>} : vector<16x128xbf16>, vector<128x128xbf16>, vector<16x128xf32> -> vector<16x128xf32>
    %44 = arith.addf %34, %43 : vector<16x128xf32>
    %45 = vector.extract_strided_slice %6 {offsets = [2, 0, 0], sizes = [1, 1, 128], strides = [1, 1, 1]} : vector<4x1x128xf32> to vector<1x1x128xf32>
    %46 = vector.shape_cast %45 : vector<1x1x128xf32> to vector<1x128xf32>
    %47 = vector.broadcast %46 : vector<1x128xf32> to vector<16x128xf32>
    %48 = arith.addf %44, %47 : vector<16x128xf32>
    %cst_24 = arith.constant 0.000000e+00 : f32
    %49 = vector.broadcast %cst_24 : f32 to vector<16x128xf32>
    %50 = arith.cmpf ogt, %48, %49 : vector<16x128xf32>
    %cst_25 = arith.constant 2.000000e-01 : f32
    %51 = vector.broadcast %cst_25 : f32 to vector<16x128xf32>
    %52 = arith.mulf %51, %48 : vector<16x128xf32>
    %53 = arith.select %50, %48, %52 : vector<16x128xi1>, vector<16x128xf32>
    %54 = arith.truncf %53 : vector<16x128xf32> to vector<16x128xbf16>
    %c3 = arith.constant 3 : index
    %c0_26 = arith.constant 0 : index
    %c0_27 = arith.constant 0 : index
    %55 = vector.load %arg4[%c3, %c0_26, %c0_27] : memref<4x128x128xbf16, #tpu.memory_space<vmem>>, vector<1x128x128xbf16>
    %56 = vector.shape_cast %55 : vector<1x128x128xbf16> to vector<128x128xbf16>
    %cst_28 = arith.constant dense<0.000000e+00> : vector<16x128xf32>
    %57 = tpu.matmul %54, %56, %cst_28 {dimension_numbers = #tpu.dot_dimension_numbers<[1], [0], [0], [1], [0, 0, 1, 1], [], []>} : vector<16x128xbf16>, vector<128x128xbf16>, vector<16x128xf32> -> vector<16x128xf32>
    %58 = arith.addf %48, %57 : vector<16x128xf32>
    %59 = vector.extract_strided_slice %6 {offsets = [3, 0, 0], sizes = [1, 1, 128], strides = [1, 1, 1]} : vector<4x1x128xf32> to vector<1x1x128xf32>
    %60 = vector.shape_cast %59 : vector<1x1x128xf32> to vector<1x128xf32>
    %61 = vector.broadcast %60 : vector<1x128xf32> to vector<16x128xf32>
    %62 = arith.addf %58, %61 : vector<16x128xf32>
    %cst_29 = arith.constant 0.000000e+00 : f32
    %63 = vector.broadcast %cst_29 : f32 to vector<16x128xf32>
    %64 = arith.cmpf ogt, %62, %63 : vector<16x128xf32>
    %cst_30 = arith.constant 2.000000e-01 : f32
    %65 = vector.broadcast %cst_30 : f32 to vector<16x128xf32>
    %66 = arith.mulf %65, %62 : vector<16x128xf32>
    %67 = arith.select %64, %62, %66 : vector<16x128xi1>, vector<16x128xf32>
    %c0_31 = arith.constant 0 : index
    %c0_32 = arith.constant 0 : index
    %68 = vector.load %arg6[%c0_31, %c0_32] : memref<16x128xf32, #tpu.memory_space<vmem>>, vector<16x128xf32>
    tpu.vector_store %arg6[%c0_31, %c0_32], %67 {strides = array<i32>} : memref<16x128xf32, #tpu.memory_space<vmem>>, vector<16x128xf32>,
    return
  }
  func.func @transform_0(%arg0: i32) -> (i32, i32) {
    %c0_i32 = arith.constant 0 : i32
    %c0_i32_0 = arith.constant 0 : i32
    return %arg0, %c0_i32 : i32, i32
  }
  func.func @transform_1(%arg0: i32) -> (i32, i32) {
    %c0_i32 = arith.constant 0 : i32
    %c0_i32_0 = arith.constant 0 : i32
    %c0_i32_1 = arith.constant 0 : i32
    return %c0_i32, %c0_i32_0 : i32, i32
  }
  func.func @transform_2(%arg0: i32) -> (i32, i32) {
    %c0_i32 = arith.constant 0 : i32
    %c0_i32_0 = arith.constant 0 : i32
    %c0_i32_1 = arith.constant 0 : i32
    return %c0_i32, %c0_i32_0 : i32, i32
  }
  func.func @transform_3(%arg0: i32) -> (i32, i32, i32) {
    %c0_i32 = arith.constant 0 : i32
    %c0_i32_0 = arith.constant 0 : i32
    %c0_i32_1 = arith.constant 0 : i32
    %c0_i32_2 = arith.constant 0 : i32
    return %c0_i32, %c0_i32_0, %c0_i32_1 : i32, i32, i32
  }
  func.func @transform_4(%arg0: i32) -> (i32, i32, i32) {
    %c0_i32 = arith.constant 0 : i32
    %c0_i32_0 = arith.constant 0 : i32
    %c0_i32_1 = arith.constant 0 : i32
    %c0_i32_2 = arith.constant 0 : i32
    return %c0_i32, %c0_i32_0, %c0_i32_1 : i32, i32, i32
  }
  func.func @transform_5(%arg0: i32) -> (i32, i32) {
    %c0_i32 = arith.constant 0 : i32
    %c0_i32_0 = arith.constant 0 : i32
    return %arg0, %c0_i32 : i32, i32
  }
}

</mosaic_0001>

<llo_original>
// kernel: tpu_custom_call.1
$region0: #{tpu_custom_call.1}
  #allocation0 [shape = 'u32[]', space=smem, size = 0x4, offset = 0x4, fixed_abs, tag = 'smem constant byte address 0x4 - core index']
  #allocation1 [shape = 'u32[72,128]{1,0:T(1,128)}', space=vmem, size = 0x9000, scoped, tag = 'internal scratch']
  %s0 = inlined_call_operand.hbm [shape: bf16[16,128], index: 0, kind: input, shape index: {}]
  %s1 = inlined_call_operand.hbm [shape: bf16[128,128], index: 1, kind: input, shape index: {}]
  %s2 = inlined_call_operand.vmem [shape: f32[1,128], index: 2, kind: input, shape index: {}]
  %s3 = inlined_call_operand.hbm [shape: bf16[4,128,128], index: 3, kind: input, shape index: {}]
  %s4 = inlined_call_operand.hbm [shape: f32[4,1,128], index: 4, kind: input, shape index: {}]
  %s5 = inlined_call_operand.hbm [shape: f32[16,128], index: 5, kind: output, shape index: {}]
  %s6 = sld [smem:[#allocation0]]
  $region46: #{tpu_custom_call.1} parent=0
    _
  %s8 = ssub.s32 1, %s6
  %s9 = scalar_select 0, %s8, %s6
  $region1: #{tpu_custom_call.1} parent=0
    #allocation2 [shape = 'u8[4096]{0}', space=vmem, size = 0x1000, scoped, tag = 'input window, operand 0, single buffered']
    #allocation3 [shape = 's32[1]{0}', space=sflag, size = 0x4, scoped, tag = 'scoped memory for tpu_custom_call.1']
    #allocation4 [shape = 's32[1]{0}', space=sflag, size = 0x4, scoped, tag = 'scoped memory for tpu_custom_call.1']
    #allocation5 [shape = 'u8[32768]{0}', space=vmem, size = 0x8000, scoped, tag = 'input window, operand 1, single buffered']
    #allocation6 [shape = 's32[1]{0}', space=sflag, size = 0x4, scoped, tag = 'scoped memory for tpu_custom_call.1']
    #allocation7 [shape = 'u8[131072]{0}', space=vmem, size = 0x20000, scoped, tag = 'input window, operand 3, single buffered']
    #allocation8 [shape = 'u8[2048]{0}', space=vmem, size = 0x800, scoped, tag = 'input window, operand 4, single buffered']
    #allocation9 [shape = 's32[1]{0}', space=sflag, size = 0x4, scoped, tag = 'scoped memory for tpu_custom_call.1']
    #allocation10 [shape = 'u8[8192]{0}', space=vmem, size = 0x2000, scoped, tag = 'output window, operand 0, single buffered']
    %10 = vsyncpa [#allocation3], 0
    %11 = vsyncpa [#allocation6], 0
    %12 = vsyncpa [#allocation9], 0
    %13 = vsyncpa [#allocation4], 0
    // Predicated region
    $region2: #{tpu_custom_call.1} parent=1 // pred_check
      _
    $region3: #{tpu_custom_call.1} parent=1 // pred_check_branch
      %15 = sbr.rel (0) target = $region5
    $region4: #{tpu_custom_call.1} parent=1 // pred_region
      %17 = vsyncadd [#allocation3], 0
      %s18 = sshll.u32 %s0, 4
      %s19 = int_to_ptr.hbm [resolvable:$true] %s18
      %s20 = sshll.u32 [#allocation2], 4
      %s21 = int_to_ptr.vmem [resolvable:$true] %s20
      %26 = dma.hbm_to_vmem [thread:$0]  %s19, 128, %s21, [#allocation3], 64, 64, 4
    $region5: #{tpu_custom_call.1} parent=1 // pred_fallthru
      _
    // Predicated region
    $region6: #{tpu_custom_call.1} parent=1 // pred_check
      _
    $region7: #{tpu_custom_call.1} parent=1 // pred_check_branch
      %28 = sbr.rel (0) target = $region9
    $region8: #{tpu_custom_call.1} parent=1 // pred_region
      %30 = vsyncadd [#allocation6], 0
      %s31 = sshll.u32 %s1, 4
      %s32 = int_to_ptr.hbm [resolvable:$true] %s31
      %s33 = sshll.u32 [#allocation5], 4
      %s34 = int_to_ptr.vmem [resolvable:$true] %s33
      %39 = dma.hbm_to_vmem [thread:$0]  %s32, 1024, %s34, [#allocation6], 64, 64, 4
    $region9: #{tpu_custom_call.1} parent=1 // pred_fallthru
      _
    // Predicated region
    $region10: #{tpu_custom_call.1} parent=1 // pred_check
      _
    $region11: #{tpu_custom_call.1} parent=1 // pred_check_branch
      %41 = sbr.rel (0) target = $region13
    $region12: #{tpu_custom_call.1} parent=1 // pred_region
      _
    $region13: #{tpu_custom_call.1} parent=1 // pred_fallthru
      _
    // Predicated region
    $region14: #{tpu_custom_call.1} parent=1 // pred_check
      _
    $region15: #{tpu_custom_call.1} parent=1 // pred_check_branch
      %43 = sbr.rel (0) target = $region17
    $region16: #{tpu_custom_call.1} parent=1 // pred_region
      %45 = vsyncadd [#allocation6], 0
      %s46 = sshll.u32 %s3, 4
      %s47 = int_to_ptr.hbm [resolvable:$true] %s46
      %s48 = sshll.u32 [#allocation7], 4
      %s49 = int_to_ptr.vmem [resolvable:$true] %s48
      %54 = dma.hbm_to_vmem [thread:$0]  %s47, 4096, %s49, [#allocation6], 64, 64, 4
    $region17: #{tpu_custom_call.1} parent=1 // pred_fallthru
      _
    // Predicated region
    $region18: #{tpu_custom_call.1} parent=1 // pred_check
      _
    $region19: #{tpu_custom_call.1} parent=1 // pred_check_branch
      %56 = sbr.rel (0) target = $region21
    $region20: #{tpu_custom_call.1} parent=1 // pred_region
      %58 = vsyncadd [#allocation9], 0
      %s59 = sshll.u32 %s4, 4
      %s60 = int_to_ptr.hbm [resolvable:$true] %s59
      %s61 = sshll.u32 [#allocation8], 4
      %s62 = int_to_ptr.vmem [resolvable:$true] %s61
      %67 = dma.hbm_to_vmem [thread:$0]  %s60, 64, %s62, [#allocation9], 16, 16, 1
    $region21: #{tpu_custom_call.1} parent=1 // pred_fallthru
      _
    // Predicated region
    $region22: #{tpu_custom_call.1} parent=1 // pred_check
      _
    $region23: #{tpu_custom_call.1} parent=1 // pred_check_branch
      %69 = sbr.rel (0) target = $region25
    $region24: #{tpu_custom_call.1} parent=1 // pred_region
      %71 = dma.done [#allocation3], 128
    $region25: #{tpu_custom_call.1} parent=1 // pred_fallthru
      _
    // Predicated region
    $region26: #{tpu_custom_call.1} parent=1 // pred_check
      _
    $region27: #{tpu_custom_call.1} parent=1 // pred_check_branch
      %73 = sbr.rel (0) target = $region29
    $region28: #{tpu_custom_call.1} parent=1 // pred_region
      %75 = dma.done [#allocation6], 1024
    $region29: #{tpu_custom_call.1} parent=1 // pred_fallthru
      _
    // Predicated region
    $region30: #{tpu_custom_call.1} parent=1 // pred_check
      _
    $region31: #{tpu_custom_call.1} parent=1 // pred_check_branch
      %77 = sbr.rel (0) target = $region33
    $region32: #{tpu_custom_call.1} parent=1 // pred_region
      %79 = dma.done [#allocation6], 4096
    $region33: #{tpu_custom_call.1} parent=1 // pred_fallthru
      _
    // Predicated region
    $region34: #{tpu_custom_call.1} parent=1 // pred_check
      _
    $region35: #{tpu_custom_call.1} parent=1 // pred_check_branch
      %81 = sbr.rel (0) target = $region37
    $region36: #{tpu_custom_call.1} parent=1 // pred_region
      %83 = dma.done [#allocation9], 64
    $region37: #{tpu_custom_call.1} parent=1 // pred_fallthru
      _
    %v84 = vld [vmem:[#allocation2] sm:$0xf]
    %v85 = vld [vmem:[#allocation2 + $0x4] sm:$0xf]
    %v86 = vld [vmem:[#allocation5] sm:$0xf]
    %v87 = vld [vmem:[#allocation5 + $0x4] sm:$0xf]
    %v88 = vld [vmem:[#allocation5 + $0x8] sm:$0xf]
    %v89 = vld [vmem:[#allocation5 + $0xc] sm:$0xf]
    %v90 = vld [vmem:[#allocation5 + $0x10] sm:$0xf]
    %v91 = vld [vmem:[#allocation5 + $0x14] sm:$0xf]
    %v92 = vld [vmem:[#allocation5 + $0x18] sm:$0xf]
    %v93 = vld [vmem:[#allocation5 + $0x1c] sm:$0xf]
    %v94 = vld [vmem:[#allocation5 + $0x20] sm:$0xf]
    %v95 = vld [vmem:[#allocation5 + $0x24] sm:$0xf]
    %v96 = vld [vmem:[#allocation5 + $0x28] sm:$0xf]
    %v97 = vld [vmem:[#allocation5 + $0x2c] sm:$0xf]
    %v98 = vld [vmem:[#allocation5 + $0x30] sm:$0xf]
    %v99 = vld [vmem:[#allocation5 + $0x34] sm:$0xf]
    %v100 = vld [vmem:[#allocation5 + $0x38] sm:$0xf]
    %v101 = vld [vmem:[#allocation5 + $0x3c] sm:$0xf]
    %v102 = vld [vmem:[%s2] sm:$0x1]
    %v104 = vperm.slane %v102, 0
    %v108 = vunpack.c.l.b16 %v84
    %v109 = vunpack.c.l.b16 %v85
    %v110 = vpack.c.b16 %v109, %v108
    %v128 = vunpack.c.l.b16 %v86
    %v129 = vunpack.c.l.b16 %v87
    %v130 = vunpack.c.l.b16 %v88
    %v131 = vunpack.c.l.b16 %v89
    %v132 = vunpack.c.l.b16 %v90
    %v133 = vunpack.c.l.b16 %v91
    %v134 = vunpack.c.l.b16 %v92
    %v135 = vunpack.c.l.b16 %v93
    %v136 = vunpack.c.l.b16 %v94
    %v137 = vunpack.c.l.b16 %v95
    %v138 = vunpack.c.l.b16 %v96
    %v139 = vunpack.c.l.b16 %v97
    %v140 = vunpack.c.l.b16 %v98
    %v141 = vunpack.c.l.b16 %v99
    %v142 = vunpack.c.l.b16 %v100
    %v143 = vunpack.c.l.b16 %v101
    %v144 = vpack.c.b16 %v129, %v128
    %v145 = vpack.c.b16 %v131, %v130
    %v146 = vpack.c.b16 %v133, %v132
    %v147 = vpack.c.b16 %v135, %v134
    %v148 = vpack.c.b16 %v137, %v136
    %v149 = vpack.c.b16 %v139, %v138
    %v150 = vpack.c.b16 %v141, %v140
    %v151 = vpack.c.b16 %v143, %v142
    %160 = vmatpush.bf16.msra.mxu0 %v151
    %161 = vmatpush.bf16.msra.mxu0 %v150
    %162 = vmatpush.bf16.msra.mxu0 %v149
    %163 = vmatpush.bf16.msra.mxu0 %v148
    %164 = vmatpush.bf16.msra.mxu0 %v147
    %165 = vmatpush.bf16.msra.mxu0 %v146
    %166 = vmatpush.bf16.msra.mxu0 %v145
    %167 = vmatpush.bf16.msra.mxu0 %v144
    %168 = vmatmul.bf16.gmra.mxu0 %v110
    %v169 = vpop.f32.mrf.mxu0
    %v170 = vadd.f32 %v104, %v169
    %v171 = vpop.f32.mrf.mxu0
    %v172 = vadd.f32 %v104, %v171
    %173 = vdwg.mxu0
    %v174 = vld [vmem:[#allocation8] sm:$0x1]
    %v175 = vld [vmem:[#allocation8 + $0x1] sm:$0x1]
    %v176 = vld [vmem:[#allocation8 + $0x2] sm:$0x1]
    %v177 = vld [vmem:[#allocation8 + $0x3] sm:$0x1]
    %vm178 = vcmp.gt.f32.partialorder %v170, 0.0
    %vm179 = vcmp.gt.f32.partialorder %v172, 0.0
    %v180 = vmul.f32 %v170, 0.2
    %v181 = vmul.f32 %v172, 0.2
    %v182 = vsel %vm178, %v170, %v180
    %v183 = vsel %vm179, %v172, %v181
    %v184 = vpack.c.bf16 %v183, %v182
    %v185 = vld [vmem:[#allocation7] sm:$0xf]
    %v186 = vld [vmem:[#allocation7 + $0x4] sm:$0xf]
    %v187 = vld [vmem:[#allocation7 + $0x8] sm:$0xf]
    %v188 = vld [vmem:[#allocation7 + $0xc] sm:$0xf]
    %v189 = vld [vmem:[#allocation7 + $0x10] sm:$0xf]
    %v190 = vld [vmem:[#allocation7 + $0x14] sm:$0xf]
    %v191 = vld [vmem:[#allocation7 + $0x18] sm:$0xf]
    %v192 = vld [vmem:[#allocation7 + $0x1c] sm:$0xf]
    %v193 = vld [vmem:[#allocation7 + $0x20] sm:$0xf]
    %v194 = vld [vmem:[#allocation7 + $0x24] sm:$0xf]
    %v195 = vld [vmem:[#allocation7 + $0x28] sm:$0xf]
    %v196 = vld [vmem:[#allocation7 + $0x2c] sm:$0xf]
    %v197 = vld [vmem:[#allocation7 + $0x30] sm:$0xf]
    %v198 = vld [vmem:[#allocation7 + $0x34] sm:$0xf]
    %v199 = vld [vmem:[#allocation7 + $0x38] sm:$0xf]
    %v200 = vld [vmem:[#allocation7 + $0x3c] sm:$0xf]
    %v217 = vunpack.c.l.b16 %v185
    %v218 = vunpack.c.l.b16 %v186
    %v219 = vunpack.c.l.b16 %v187
    %v220 = vunpack.c.l.b16 %v188
    %v221 = vunpack.c.l.b16 %v189
    %v222 = vunpack.c.l.b16 %v190
    %v223 = vunpack.c.l.b16 %v191
    %v224 = vunpack.c.l.b16 %v192
    %v225 = vunpack.c.l.b16 %v193
    %v226 = vunpack.c.l.b16 %v194
    %v227 = vunpack.c.l.b16 %v195
    %v228 = vunpack.c.l.b16 %v196
    %v229 = vunpack.c.l.b16 %v197
    %v230 = vunpack.c.l.b16 %v198
    %v231 = vunpack.c.l.b16 %v199
    %v232 = vunpack.c.l.b16 %v200
    %v233 = vpack.c.b16 %v218, %v217
    %v234 = vpack.c.b16 %v220, %v219
    %v235 = vpack.c.b16 %v222, %v221
    %v236 = vpack.c.b16 %v224, %v223
    %v237 = vpack.c.b16 %v226, %v225
    %v238 = vpack.c.b16 %v228, %v227
    %v239 = vpack.c.b16 %v230, %v229
    %v240 = vpack.c.b16 %v232, %v231
    %249 = vmatpush.bf16.msra.mxu0 %v240
    %250 = vmatpush.bf16.msra.mxu0 %v239
    %251 = vmatpush.bf16.msra.mxu0 %v238
    %252 = vmatpush.bf16.msra.mxu0 %v237
    %253 = vmatpush.bf16.msra.mxu0 %v236
    %254 = vmatpush.bf16.msra.mxu0 %v235
    %255 = vmatpush.bf16.msra.mxu0 %v234
    %256 = vmatpush.bf16.msra.mxu0 %v233
    %257 = vmatmul.bf16.gmra.mxu0 %v184
    %v258 = vpop.f32.mrf.mxu0
    %v259 = vadd.f32 0.0, %v258
    %v260 = vpop.f32.mrf.mxu0
    %v261 = vadd.f32 0.0, %v260
    %262 = vdwg.mxu0
    %v263 = vadd.f32 %v170, %v259
    %v264 = vadd.f32 %v172, %v261
    %v266 = vperm.slane %v174, 0
    %v268 = vadd.f32 %v263, %v266
    %v269 = vadd.f32 %v264, %v266
    %vm270 = vcmp.gt.f32.partialorder %v268, 0.0
    %vm271 = vcmp.gt.f32.partialorder %v269, 0.0
    %v272 = vmul.f32 %v268, 0.2
    %v273 = vmul.f32 %v269, 0.2
    %v274 = vsel %vm270, %v268, %v272
    %v275 = vsel %vm271, %v269, %v273
    %v276 = vpack.c.bf16 %v275, %v274
    %s277 = scalar_lea.vmem [#allocation7], 64
    %v278 = vld [vmem:[%s277] sm:$0xf]
    %v279 = vld [vmem:[%s277 + $0x4] sm:$0xf]
    %v280 = vld [vmem:[%s277 + $0x8] sm:$0xf]
    %v281 = vld [vmem:[%s277 + $0xc] sm:$0xf]
    %v282 = vld [vmem:[%s277 + $0x10] sm:$0xf]
    %v283 = vld [vmem:[%s277 + $0x14] sm:$0xf]
    %v284 = vld [vmem:[%s277 + $0x18] sm:$0xf]
    %v285 = vld [vmem:[%s277 + $0x1c] sm:$0xf]
    %v286 = vld [vmem:[%s277 + $0x20] sm:$0xf]
    %v287 = vld [vmem:[%s277 + $0x24] sm:$0xf]
    %v288 = vld [vmem:[%s277 + $0x28] sm:$0xf]
    %v289 = vld [vmem:[%s277 + $0x2c] sm:$0xf]
    %v290 = vld [vmem:[%s277 + $0x30] sm:$0xf]
    %v291 = vld [vmem:[%s277 + $0x34] sm:$0xf]
    %v292 = vld [vmem:[%s277 + $0x38] sm:$0xf]
    %v293 = vld [vmem:[%s277 + $0x3c] sm:$0xf]
    %v310 = vunpack.c.l.b16 %v278
    %v311 = vunpack.c.l.b16 %v279
    %v312 = vunpack.c.l.b16 %v280
    %v313 = vunpack.c.l.b16 %v281
    %v314 = vunpack.c.l.b16 %v282
    %v315 = vunpack.c.l.b16 %v283
    %v316 = vunpack.c.l.b16 %v284
    %v317 = vunpack.c.l.b16 %v285
    %v318 = vunpack.c.l.b16 %v286
    %v319 = vunpack.c.l.b16 %v287
    %v320 = vunpack.c.l.b16 %v288
    %v321 = vunpack.c.l.b16 %v289
    %v322 = vunpack.c.l.b16 %v290
    %v323 = vunpack.c.l.b16 %v291
    %v324 = vunpack.c.l.b16 %v292
    %v325 = vunpack.c.l.b16 %v293
    %v326 = vpack.c.b16 %v311, %v310
    %v327 = vpack.c.b16 %v313, %v312
    %v328 = vpack.c.b16 %v315, %v314
    %v329 = vpack.c.b16 %v317, %v316
    %v330 = vpack.c.b16 %v319, %v318
    %v331 = vpack.c.b16 %v321, %v320
    %v332 = vpack.c.b16 %v323, %v322
    %v333 = vpack.c.b16 %v325, %v324
    %342 = vmatpush.bf16.msra.mxu0 %v333
    %343 = vmatpush.bf16.msra.mxu0 %v332
    %344 = vmatpush.bf16.msra.mxu0 %v331
    %345 = vmatpush.bf16.msra.mxu0 %v330
    %346 = vmatpush.bf16.msra.mxu0 %v329
    %347 = vmatpush.bf16.msra.mxu0 %v328
    %348 = vmatpush.bf16.msra.mxu0 %v327
    %349 = vmatpush.bf16.msra.mxu0 %v326
    %350 = vmatmul.bf16.gmra.mxu0 %v276
    %v351 = vpop.f32.mrf.mxu0
    %v352 = vadd.f32 0.0, %v351
    %v353 = vpop.f32.mrf.mxu0
    %v354 = vadd.f32 0.0, %v353
    %355 = vdwg.mxu0
    %v356 = vadd.f32 %v268, %v352
    %v357 = vadd.f32 %v269, %v354
    %v359 = vperm.slane %v175, 0
    %v361 = vadd.f32 %v356, %v359
    %v362 = vadd.f32 %v357, %v359
    %vm363 = vcmp.gt.f32.partialorder %v361, 0.0
    %vm364 = vcmp.gt.f32.partialorder %v362, 0.0
    %v365 = vmul.f32 %v361, 0.2
    %v366 = vmul.f32 %v362, 0.2
    %v367 = vsel %vm363, %v361, %v365
    %v368 = vsel %vm364, %v362, %v366
    %v369 = vpack.c.bf16 %v368, %v367
    %s370 = scalar_lea.vmem [#allocation7], 128
    %v371 = vld [vmem:[%s370] sm:$0xf]
    %v372 = vld [vmem:[%s370 + $0x4] sm:$0xf]
    %v373 = vld [vmem:[%s370 + $0x8] sm:$0xf]
    %v374 = vld [vmem:[%s370 + $0xc] sm:$0xf]
    %v375 = vld [vmem:[%s370 + $0x10] sm:$0xf]
    %v376 = vld [vmem:[%s370 + $0x14] sm:$0xf]
    %v377 = vld [vmem:[%s370 + $0x18] sm:$0xf]
    %v378 = vld [vmem:[%s370 + $0x1c] sm:$0xf]
    %v379 = vld [vmem:[%s370 + $0x20] sm:$0xf]
    %v380 = vld [vmem:[%s370 + $0x24] sm:$0xf]
    %v381 = vld [vmem:[%s370 + $0x28] sm:$0xf]
    %v382 = vld [vmem:[%s370 + $0x2c] sm:$0xf]
    %v383 = vld [vmem:[%s370 + $0x30] sm:$0xf]
    %v384 = vld [vmem:[%s370 + $0x34] sm:$0xf]
    %v385 = vld [vmem:[%s370 + $0x38] sm:$0xf]
    %v386 = vld [vmem:[%s370 + $0x3c] sm:$0xf]
    %v403 = vunpack.c.l.b16 %v371
    %v404 = vunpack.c.l.b16 %v372
    %v405 = vunpack.c.l.b16 %v373
    %v406 = vunpack.c.l.b16 %v374
    %v407 = vunpack.c.l.b16 %v375
    %v408 = vunpack.c.l.b16 %v376
    %v409 = vunpack.c.l.b16 %v377
    %v410 = vunpack.c.l.b16 %v378
    %v411 = vunpack.c.l.b16 %v379
    %v412 = vunpack.c.l.b16 %v380
    %v413 = vunpack.c.l.b16 %v381
    %v414 = vunpack.c.l.b16 %v382
    %v415 = vunpack.c.l.b16 %v383
    %v416 = vunpack.c.l.b16 %v384
    %v417 = vunpack.c.l.b16 %v385
    %v418 = vunpack.c.l.b16 %v386
    %v419 = vpack.c.b16 %v404, %v403
    %v420 = vpack.c.b16 %v406, %v405
    %v421 = vpack.c.b16 %v408, %v407
    %v422 = vpack.c.b16 %v410, %v409
    %v423 = vpack.c.b16 %v412, %v411
    %v424 = vpack.c.b16 %v414, %v413
    %v425 = vpack.c.b16 %v416, %v415
    %v426 = vpack.c.b16 %v418, %v417
    %435 = vmatpush.bf16.msra.mxu0 %v426
    %436 = vmatpush.bf16.msra.mxu0 %v425
    %437 = vmatpush.bf16.msra.mxu0 %v424
    %438 = vmatpush.bf16.msra.mxu0 %v423
    %439 = vmatpush.bf16.msra.mxu0 %v422
    %440 = vmatpush.bf16.msra.mxu0 %v421
    %441 = vmatpush.bf16.msra.mxu0 %v420
    %442 = vmatpush.bf16.msra.mxu0 %v419
    %443 = vmatmul.bf16.gmra.mxu0 %v369
    %v444 = vpop.f32.mrf.mxu0
    %v445 = vadd.f32 0.0, %v444
    %v446 = vpop.f32.mrf.mxu0
    %v447 = vadd.f32 0.0, %v446
    %448 = vdwg.mxu0
    %v449 = vadd.f32 %v361, %v445
    %v450 = vadd.f32 %v362, %v447
    %v452 = vperm.slane %v176, 0
    %v454 = vadd.f32 %v449, %v452
    %v455 = vadd.f32 %v450, %v452
    %vm456 = vcmp.gt.f32.partialorder %v454, 0.0
    %vm457 = vcmp.gt.f32.partialorder %v455, 0.0
    %v458 = vmul.f32 %v454, 0.2
    %v459 = vmul.f32 %v455, 0.2
    %v460 = vsel %vm456, %v454, %v458
    %v461 = vsel %vm457, %v455, %v459
    %v462 = vpack.c.bf16 %v461, %v460
    %s463 = scalar_lea.vmem [#allocation7], 192
    %v464 = vld [vmem:[%s463] sm:$0xf]
    %v465 = vld [vmem:[%s463 + $0x4] sm:$0xf]
    %v466 = vld [vmem:[%s463 + $0x8] sm:$0xf]
    %v467 = vld [vmem:[%s463 + $0xc] sm:$0xf]
    %v468 = vld [vmem:[%s463 + $0x10] sm:$0xf]
    %v469 = vld [vmem:[%s463 + $0x14] sm:$0xf]
    %v470 = vld [vmem:[%s463 + $0x18] sm:$0xf]
    %v471 = vld [vmem:[%s463 + $0x1c] sm:$0xf]
    %v472 = vld [vmem:[%s463 + $0x20] sm:$0xf]
    %v473 = vld [vmem:[%s463 + $0x24] sm:$0xf]
    %v474 = vld [vmem:[%s463 + $0x28] sm:$0xf]
    %v475 = vld [vmem:[%s463 + $0x2c] sm:$0xf]
    %v476 = vld [vmem:[%s463 + $0x30] sm:$0xf]
    %v477 = vld [vmem:[%s463 + $0x34] sm:$0xf]
    %v478 = vld [vmem:[%s463 + $0x38] sm:$0xf]
    %v479 = vld [vmem:[%s463 + $0x3c] sm:$0xf]
    %v496 = vunpack.c.l.b16 %v464
    %v497 = vunpack.c.l.b16 %v465
    %v498 = vunpack.c.l.b16 %v466
    %v499 = vunpack.c.l.b16 %v467
    %v500 = vunpack.c.l.b16 %v468
    %v501 = vunpack.c.l.b16 %v469
    %v502 = vunpack.c.l.b16 %v470
    %v503 = vunpack.c.l.b16 %v471
    %v504 = vunpack.c.l.b16 %v472
    %v505 = vunpack.c.l.b16 %v473
    %v506 = vunpack.c.l.b16 %v474
    %v507 = vunpack.c.l.b16 %v475
    %v508 = vunpack.c.l.b16 %v476
    %v509 = vunpack.c.l.b16 %v477
    %v510 = vunpack.c.l.b16 %v478
    %v511 = vunpack.c.l.b16 %v479
    %v512 = vpack.c.b16 %v497, %v496
    %v513 = vpack.c.b16 %v499, %v498
    %v514 = vpack.c.b16 %v501, %v500
    %v515 = vpack.c.b16 %v503, %v502
    %v516 = vpack.c.b16 %v505, %v504
    %v517 = vpack.c.b16 %v507, %v506
    %v518 = vpack.c.b16 %v509, %v508
    %v519 = vpack.c.b16 %v511, %v510
    %528 = vmatpush.bf16.msra.mxu0 %v519
    %529 = vmatpush.bf16.msra.mxu0 %v518
    %530 = vmatpush.bf16.msra.mxu0 %v517
    %531 = vmatpush.bf16.msra.mxu0 %v516
    %532 = vmatpush.bf16.msra.mxu0 %v515
    %533 = vmatpush.bf16.msra.mxu0 %v514
    %534 = vmatpush.bf16.msra.mxu0 %v513
    %535 = vmatpush.bf16.msra.mxu0 %v512
    %536 = vmatmul.bf16.gmra.mxu0 %v462
    %v537 = vpop.f32.mrf.mxu0
    %v538 = vadd.f32 0.0, %v537
    %v539 = vpop.f32.mrf.mxu0
    %v540 = vadd.f32 0.0, %v539
    %541 = vdwg.mxu0
    %v542 = vadd.f32 %v454, %v538
    %v543 = vadd.f32 %v455, %v540
    %v545 = vperm.slane %v177, 0
    %v547 = vadd.f32 %v542, %v545
    %v548 = vadd.f32 %v543, %v545
    %vm549 = vcmp.gt.f32.partialorder %v547, 0.0
    %vm550 = vcmp.gt.f32.partialorder %v548, 0.0
    %v551 = vmul.f32 %v547, 0.2
    %v552 = vmul.f32 %v548, 0.2
    %v553 = vsel %vm549, %v547, %v551
    %v554 = vsel %vm550, %v548, %v552
    %555 = vst [vmem:[#allocation10] sm:$0xff] %v553
    %556 = vst [vmem:[#allocation10 + $0x8] sm:$0xff] %v554
    // Predicated region
    $region38: #{tpu_custom_call.1} parent=1 // pred_check
      _
    $region39: #{tpu_custom_call.1} parent=1 // pred_check_branch
      %558 = sbr.rel (0) target = $region41
    $region40: #{tpu_custom_call.1} parent=1 // pred_region
      %560 = vsyncadd [#allocation4], 0
      %s561 = sshll.u32 [#allocation10], 4
      %s562 = int_to_ptr.vmem [resolvable:$true] %s561
      %s563 = sshll.u32 %s5, 4
      %s564 = int_to_ptr.hbm [resolvable:$true] %s563
      %569 = dma.vmem_to_hbm [thread:$0]  %s562, 256, %s564, [#allocation4], 128, 128, 8
    $region41: #{tpu_custom_call.1} parent=1 // pred_fallthru
      _
    // Predicated region
    $region42: #{tpu_custom_call.1} parent=1 // pred_check
      _
    $region43: #{tpu_custom_call.1} parent=1 // pred_check_branch
      %571 = sbr.rel (0) target = $region45
    $region44: #{tpu_custom_call.1} parent=1 // pred_region
      %573 = dma.done [#allocation4], 256
    $region45: #{tpu_custom_call.1} parent=1 // pred_fallthru
      _
    %574 = vsyncpa [#allocation3], 1
    %575 = vsyncpa [#allocation6], 1
    %576 = vsyncpa [#allocation9], 1
    %577 = vsyncpa [#allocation4], 1

</llo_original>
